<compile_context>
chip_gen: v6e
topology: v6e:2x2x1
jax: 0.10.0
libtpu: 0.0.40
codegen_flags: <defaults>
</compile_context>

<pallas_src>
import jax
import jax.numpy as jnp
from jax import lax
from jax.experimental import pallas as pl
from jax.experimental.pallas import tpu as pltpu

LABEL_SMOOTH = 0.1
_VMEM = pl.BlockSpec(memory_space=pltpu.MemorySpace.VMEM)
_SMEM = pl.BlockSpec(memory_space=pltpu.MemorySpace.SMEM)


# ----------------------------------------------------------------------------
# Kernel A: fused image branch, grid over blocks of images.
#   per block: qformer linear -> VQ -> quantize -> distiller -> loss partials,
#   plus the last-token quant row of each image (for the contrast head).
# ----------------------------------------------------------------------------
def _image_branch_kernel(x_ref, wq_ref, cb_ref, wd_ref,
                         idx_ref, qlast_ref, stats_ref):
    BI, N, D_img = x_ref.shape
    M = BI * N
    # Merge (images, tokens) so every matmul sees M rows (better MXU util).
    # NOTE: N is a multiple of 8 here so this collapse is a pure relabeling.
    x = x_ref[...].reshape(M, D_img)                       # (M, D_img) f32
    x_bf = x.astype(jnp.bfloat16)

    # --- qformer linear (bf16 x bf16 -> f32 accumulate) ----------------------
    qf = jnp.dot(x_bf, wq_ref[...], preferred_element_type=jnp.float32)   # (M, Dq)

    # --- VQ nearest-codebook search, lane-oriented (codes on sublanes) -------
    cb = cb_ref[...]                                        # (K, Dq) f32
    K = cb.shape[0]
    c2 = jnp.sum(cb * cb, axis=-1, keepdims=True)           # (K, 1)
    # score[k, m] = ||c_k||^2 - 2 * x_m . c_k   (argmin over k == argmin dist)
    xc_t = lax.dot_general(cb.astype(jnp.bfloat16), qf.astype(jnp.bfloat16),
                           (((1,), (1,)), ((), ())),
                           preferred_element_type=jnp.float32)            # (K, M)
    score = c2 - 2.0 * xc_t
    code_i = lax.broadcasted_iota(jnp.int32, score.shape, 0)              # (K, M)
    smin = jnp.min(score, axis=0, keepdims=True)                          # (1, M)
    idx = jnp.min(jnp.where(score <= smin, code_i, K), axis=0, keepdims=True)  # (1, M)
    idx_ref[0] = idx

    # quant = one-hot^T @ codebook  (exact f32 codebook rows)
    onehot_t = (code_i == idx).astype(jnp.float32)                        # (K, M)
    quant = lax.dot_general(onehot_t, cb, (((0,), (0,)), ((), ())),
                            preferred_element_type=jnp.float32)           # (M, Dq)

    # TODO(synk): forward-only; no straight-through estimator / codebook loss.
    dq = qf - quant
    commit_part = jnp.sum(dq * dq)                          # sum sq err this block

    # last-token quant row per image (image_cls_token_type == 'last') picked
    # with a tiny selection matmul so no layout-changing reshape is needed.
    r = lax.broadcasted_iota(jnp.int32, (BI, M), 0)
    c = lax.broadcasted_iota(jnp.int32, (BI, M), 1)
    sel = (c == r * N + (N - 1)).astype(jnp.float32)        # (BI, M)
    qlast = jnp.dot(sel, quant, preferred_element_type=jnp.float32)       # (BI, Dq)
    qlast_ref[0] = qlast

    # --- distiller linear + cosine distill partial ----------------------------
    recon = jnp.dot(quant.astype(jnp.bfloat16), wd_ref[...],
                    preferred_element_type=jnp.float32)                   # (M, D_img)
    rn = recon * lax.rsqrt(jnp.sum(recon * recon, axis=-1, keepdims=True))
    tn = x * lax.rsqrt(jnp.sum(x * x, axis=-1, keepdims=True))
    cos = jnp.sum(rn * tn, axis=-1, keepdims=True)                        # (M, 1)
    cos_part = jnp.sum(1.0 - cos)

    # lane-dense stats row: lane0 = commit partial, lane1 = cosine partial
    lane = lax.broadcasted_iota(jnp.int32, (1, 128), 1)
    stats_ref[0] = (jnp.where(lane == 0, commit_part, 0.0)
                    + jnp.where(lane == 1, cos_part, 0.0))


def image_branch(image_embeds, wq_bf, codebook_f32, wd_bf, block_b):
    B, N, D_img = image_embeds.shape
    K, Dq = codebook_f32.shape
    nb = B // block_b
    return pl.pallas_call(
        _image_branch_kernel,
        out_shape=(
            jax.ShapeDtypeStruct((nb, 1, block_b * N), jnp.int32),   # VQ indices
            jax.ShapeDtypeStruct((nb, block_b, Dq), jnp.float32),    # last-token quant
            jax.ShapeDtypeStruct((nb, 1, 128), jnp.float32),         # loss partials
        ),
        grid=(nb,),
        in_specs=[
            pl.BlockSpec((block_b, N, D_img), lambda b: (b, 0, 0)),
            pl.BlockSpec((D_img, Dq), lambda b: (0, 0)),
            pl.BlockSpec((K, Dq), lambda b: (0, 0)),
            pl.BlockSpec((Dq, D_img), lambda b: (0, 0)),
        ],
        out_specs=(
            pl.BlockSpec((1, 1, block_b * N), lambda b: (b, 0, 0)),
            pl.BlockSpec((1, block_b, Dq), lambda b: (b, 0, 0)),
            pl.BlockSpec((1, 1, 128), lambda b: (b, 0, 0)),
        ),
        compiler_params=pltpu.CompilerParams(
            dimension_semantics=("parallel",),
            vmem_limit_bytes=32 * 1024 * 1024,
        ),
    )(image_embeds, wq_bf, codebook_f32, wd_bf)


# ----------------------------------------------------------------------------
# Kernel B: text-CLS linear + contrast head + projections + contrastive loss.
# Single device => all_gather is identity, rank = 0, targets = arange(B).
# ----------------------------------------------------------------------------
def _contrast_kernel(qlast_ref, tok_ref, wh_ref, wtq_ref, wip_ref, wtp_ref,
                     scale_ref, out_ref):
    bsz = qlast_ref.shape[0]
    bf = jnp.float32(bsz)

    img_h = jnp.dot(qlast_ref[...].astype(jnp.bfloat16), wh_ref[...],
                    preferred_element_type=jnp.float32)          # (B, Dh)
    txt_h = jnp.dot(tok_ref[...].astype(jnp.bfloat16), wtq_ref[...],
                    preferred_element_type=jnp.float32)          # (B, Dh)
    img = jnp.dot(img_h.astype(jnp.bfloat16), wip_ref[...],
                  preferred_element_type=jnp.float32)            # (B, P)
    txt = jnp.dot(txt_h.astype(jnp.bfloat16), wtp_ref[...],
                  preferred_element_type=jnp.float32)            # (B, P)

    img = img * lax.rsqrt(jnp.sum(img * img, axis=-1, keepdims=True))
    txt = txt * lax.rsqrt(jnp.sum(txt * txt, axis=-1, keepdims=True))

    inv_scale = 1.0 / scale_ref[0]                               # torch: sim / logit_scale
    # sim[i, t] = img_i . txt_t / scale ;  sim_t2i == sim.T (reuse, no 2nd matmul)
    sim = lax.dot_general(img, txt, (((1,), (1,)), ((), ())),
                          preferred_element_type=jnp.float32) * inv_scale  # (B, B)

    row = lax.broadcasted_iota(jnp.int32, sim.shape, 0)
    col = lax.broadcasted_iota(jnp.int32, sim.shape, 1)
    diag = row == col

    def ce_ls(class_axis):
        m = jnp.max(sim, axis=class_axis, keepdims=True)
        lse = jnp.log(jnp.sum(jnp.exp(sim - m), axis=class_axis, keepdims=True)) + m
        logp = sim - lse
        nll = -jnp.sum(jnp.where(diag, logp, 0.0)) / bf
        smooth = -jnp.sum(logp) / (bf * bf)
        return (1.0 - LABEL_SMOOTH) * nll + LABEL_SMOOTH * smooth

    def acc(class_axis):
        mx = jnp.max(sim, axis=class_axis, keepdims=True)
        idxmat = col if class_axis == 1 else row
        amax = jnp.min(jnp.where(sim >= mx, idxmat, bsz),
                       axis=class_axis, keepdims=True)
        ex = lax.broadcasted_iota(jnp.int32, amax.shape, 1 - class_axis)
        return jnp.sum((amax == ex).astype(jnp.float32)) / bf

    contrast_loss = 0.5 * (ce_ls(1) + ce_ls(0))
    i2t_acc = acc(1)
    t2i_acc = acc(0)

    lane = lax.broadcasted_iota(jnp.int32, (1, 128), 1)
    out_ref[...] = (jnp.where(lane == 0, contrast_loss, 0.0)
                    + jnp.where(lane == 1, i2t_acc, 0.0)
                    + jnp.where(lane == 2, t2i_acc, 0.0))


def pallas_contrastive(quant_last, tok0, wh_bf, wtq_bf, wip_bf, wtp_bf, logit_scale):
    return pl.pallas_call(
        _contrast_kernel,
        out_shape=jax.ShapeDtypeStruct((1, 128), jnp.float32),
        in_specs=[_VMEM, _VMEM, _VMEM, _VMEM, _VMEM, _VMEM, _SMEM],
        out_specs=_VMEM,
        compiler_params=pltpu.CompilerParams(vmem_limit_bytes=32 * 1024 * 1024),
    )(quant_last, tok0, wh_bf, wtq_bf, wip_bf, wtp_bf, logit_scale)


def _pick_block_b(B, cap=8):
    """Largest divisor of B that is <= cap (images processed per grid step)."""
    bb = 1
    for c in range(1, min(B, cap) + 1):
        if B % c == 0:
            bb = c
    return bb


# ----------------------------------------------------------------------------
# Forward pass (glue in plain JAX, all hot paths in the two fused kernels).
# ----------------------------------------------------------------------------
def forward(params, image_embeds, input_ids, text_attention_mask,
            scale_commit_loss=1.0, scale_contrast_loss=1.0,
            scale_distill_loss=1.0):
    B, N, D_img = image_embeds.shape

    # pre-cast matmul weights to bf16 once (halves HBM->VMEM traffic)
    wq = params["qformer_w"].astype(jnp.bfloat16)
    wd = params["distill_w"].astype(jnp.bfloat16)
    wh = params["contrast_head_w"].astype(jnp.bfloat16)
    wtq = params["text_qformer_w"].astype(jnp.bfloat16)
    wip = params["image_proj_w"].astype(jnp.bfloat16)
    wtp = params["text_proj_w"].astype(jnp.bfloat16)
    cb = params["codebook"].astype(jnp.float32)
    Dq = cb.shape[1]
    # TODO(synk): codebook K is tiny here; for production K pad to >=128 lanes
    # and use an online running-min over codebook tiles instead of full scores.

    # --- fused image branch: qformer + VQ + distiller + loss partials --------
    block_b = _pick_block_b(B)
    idx3, qlast3, stats3 = image_branch(
        image_embeds.astype(jnp.float32), wq, cb, wd, block_b)
    indices = idx3.reshape(B, N)
    quant_last = qlast3.reshape(B, Dq)
    stats = stats3.reshape(-1, 128)
    commit_loss = jnp.sum(stats[:, 0]) / (B * N * Dq)
    distill_loss = jnp.sum(stats[:, 1]) / (B * N)

    out = {}
    out["indices"] = indices
    out["commit_loss"] = commit_loss
    out["distill_loss"] = distill_loss
    total_loss = scale_commit_loss * commit_loss + scale_distill_loss * distill_loss

    # --- text branch: CLS token sliced BEFORE the linear ----------------------
    # TODO(synk): real BLIP2-style qformer cross-attention is not reproduced;
    # a token-embedding + linear stand-in is used for the text encoder.  The
    # per-example embedding gather stays in the JAX wrapper.
    tok0 = params["text_embed"][input_ids[:, 0]] * text_attention_mask[:, 0:1]
    res = pallas_contrastive(
        quant_last, tok0.astype(jnp.float32),
        wh, wtq, wip, wtp,
        params["logit_scale"].reshape(1).astype(jnp.float32))
    contrast_loss = res[0, 0]
    out["contrast_loss"] = contrast_loss
    out["i2t_acc"] = res[0, 1]
    out["t2i_acc"] = res[0, 2]
    total_loss = total_loss + scale_contrast_loss * contrast_loss
    out["total_loss"] = total_loss
    return out


# ----------------------------------------------------------------------------
if __name__ == "__main__":
    # small, forward-consistent shapes
    B, N, D_img = 2, 8, 32          # image_embeds: (B, N, D_img)
    D_q = 32                        # qformer / quantizer embed dim
    D_head = 32                     # contrast_head.perceiver projection_dim
    P = 32                          # projection_dim of image/text proj
    K_cb = 16                       # codebook size
    T, V = 8, 64                    # text seq len, vocab size

    key = jax.random.PRNGKey(0)
    ks = jax.random.split(key, 12)

    params = {
        "qformer_w":       0.05 * jax.random.normal(ks[0], (D_img, D_q), jnp.float32),
        "codebook":        0.05 * jax.random.normal(ks[1], (K_cb, D_q), jnp.float32),
        "distill_w":       0.05 * jax.random.normal(ks[2], (D_q, D_img), jnp.float32),
        "text_embed":      0.05 * jax.random.normal(ks[3], (V, D_q), jnp.float32),
        "text_qformer_w":  0.05 * jax.random.normal(ks[4], (D_q, D_head), jnp.float32),
        "contrast_head_w": 0.05 * jax.random.normal(ks[5], (D_q, D_head), jnp.float32),
        "image_proj_w":    0.05 * jax.random.normal(ks[6], (D_head, P), jnp.float32),
        "text_proj_w":     0.05 * jax.random.normal(ks[7], (D_head, P), jnp.float32),
        "logit_scale":     jnp.full((1,), 0.07, jnp.float32),
    }

    image_embeds = jax.random.normal(ks[8], (B, N, D_img), jnp.float32)
    input_ids = jax.random.randint(ks[9], (B, T), 0, V, dtype=jnp.int32)
    text_attention_mask = jnp.ones((B, T), jnp.float32)

    out = forward(params, image_embeds, input_ids, text_attention_mask)
    jax.block_until_ready(out)
    print("KERNEL_OK")
</pallas_src>

<mosaic_0001>
module attributes {stable_mosaic.version = 11 : i64} {
  func.func @_image_branch_kernel(%arg0: i32, %arg1: memref<2x8x32xf32, #tpu.memory_space<vmem>>, %arg2: memref<32x32xbf16, #tpu.memory_space<vmem>>, %arg3: memref<16x32xf32, #tpu.memory_space<vmem>>, %arg4: memref<32x32xbf16, #tpu.memory_space<vmem>>, %arg5: memref<1x1x16xi32, #tpu.memory_space<vmem>>, %arg6: memref<1x2x32xf32, #tpu.memory_space<vmem>>, %arg7: memref<1x1x128xf32, #tpu.memory_space<vmem>>) attributes {dimension_semantics = [#tpu.dimension_semantics<parallel>], iteration_bounds = array<i64: 1>, scalar_prefetch = 0 : i64, scratch_operands = 0 : i64, tpu.core_type = #tpu.core_type<tc>, window_params = [{transform_indices = @transform_0, window_bounds = array<i64: 2, 8, 32>}, {pipeline_mode = #tpu.pipeline_mode<synchronous>, transform_indices = @transform_1, window_bounds = array<i64: 32, 32>}, {pipeline_mode = #tpu.pipeline_mode<synchronous>, transform_indices = @transform_2, window_bounds = array<i64: 16, 32>}, {pipeline_mode = #tpu.pipeline_mode<synchronous>, transform_indices = @transform_3, window_bounds = array<i64: 32, 32>}, {transform_indices = @transform_4, window_bounds = array<i64: 1, 1, 16>}, {transform_indices = @transform_5, window_bounds = array<i64: 1, 2, 32>}, {transform_indices = @transform_6, window_bounds = array<i64: 1, 1, 128>}]} {
    %c0 = arith.constant 0 : index
    %c0_0 = arith.constant 0 : index
    %c0_1 = arith.constant 0 : index
    %0 = vector.load %arg1[%c0, %c0_0, %c0_1] : memref<2x8x32xf32, #tpu.memory_space<vmem>>, vector<2x8x32xf32>
    %1 = vector.shape_cast %0 : vector<2x8x32xf32> to vector<16x32xf32>
    %2 = arith.truncf %1 : vector<16x32xf32> to vector<16x32xbf16>
    %c0_2 = arith.constant 0 : index
    %c0_3 = arith.constant 0 : index
    %3 = vector.load %arg2[%c0_2, %c0_3] : memref<32x32xbf16, #tpu.memory_space<vmem>>, vector<32x32xbf16>
    %cst = arith.constant dense<0.000000e+00> : vector<16x32xf32>
    %4 = tpu.matmul %2, %3, %cst {dimension_numbers = #tpu.dot_dimension_numbers<[1], [0], [0], [1], [0, 0, 1, 1], [], []>} : vector<16x32xbf16>, vector<32x32xbf16>, vector<16x32xf32> -> vector<16x32xf32>
    %c0_4 = arith.constant 0 : index
    %c0_5 = arith.constant 0 : index
    %5 = vector.load %arg3[%c0_4, %c0_5] : memref<16x32xf32, #tpu.memory_space<vmem>>, vector<16x32xf32>
    %6 = arith.mulf %5, %5 : vector<16x32xf32>
    %cst_6 = arith.constant dense<0.000000e+00> : vector<16xf32>
    %7 = vector.multi_reduction <add>, %6, %cst_6 [1] : vector<16x32xf32> to vector<16xf32>
    %8 = vector.shape_cast %7 : vector<16xf32> to vector<16x1xf32>
    %9 = arith.truncf %5 : vector<16x32xf32> to vector<16x32xbf16>
    %10 = arith.truncf %4 : vector<16x32xf32> to vector<16x32xbf16>
    %cst_7 = arith.constant dense<0.000000e+00> : vector<16x16xf32>
    %11 = tpu.matmul %9, %10, %cst_7 {dimension_numbers = #tpu.dot_dimension_numbers<[1], [1], [0], [0], [0, 0, 1, 0], [], []>} : vector<16x32xbf16>, vector<16x32xbf16>, vector<16x16xf32> -> vector<16x16xf32>
    %cst_8 = arith.constant 2.000000e+00 : f32
    %12 = vector.broadcast %cst_8 : f32 to vector<16x16xf32>
    %13 = arith.mulf %12, %11 : vector<16x16xf32>
    %14 = vector.broadcast %8 : vector<16x1xf32> to vector<16x16xf32>
    %15 = arith.subf %14, %13 : vector<16x16xf32>
    %16 = tpu.iota {dimensions = array<i32: 0>} : vector<16x16xi32>
    %cst_9 = arith.constant dense<0x7F800000> : vector<16xf32>
    %17 = vector.multi_reduction <minimumf>, %15, %cst_9 [0] : vector<16x16xf32> to vector<16xf32>
    %18 = vector.shape_cast %17 : vector<16xf32> to vector<1x16xf32>
    %19 = vector.broadcast %18 : vector<1x16xf32> to vector<16x16xf32>
    %20 = arith.cmpf ole, %15, %19 : vector<16x16xf32>
    %c16_i32 = arith.constant 16 : i32
    %21 = vector.broadcast %c16_i32 : i32 to vector<16x16xi32>
    %22 = arith.select %20, %16, %21 : vector<16x16xi1>, vector<16x16xi32>
    %cst_10 = arith.constant dense<2147483647> : vector<16xi32>
    %23 = vector.multi_reduction <minsi>, %22, %cst_10 [0] : vector<16x16xi32> to vector<16xi32>
    %24 = vector.shape_cast %23 : vector<16xi32> to vector<1x16xi32>
    %c0_11 = arith.constant 0 : index
    %c0_12 = arith.constant 0 : index
    %c0_13 = arith.constant 0 : index
    %25 = vector.load %arg5[%c0_11, %c0_12, %c0_13] : memref<1x1x16xi32, #tpu.memory_space<vmem>>, vector<1x1x16xi32>
    %26 = vector.shape_cast %25 : vector<1x1x16xi32> to vector<1x16xi32>
    %27 = vector.shape_cast %24 : vector<1x16xi32> to vector<1x1x16xi32>
    tpu.vector_store %arg5[%c0_11, %c0_12, %c0_13], %27 {strides = array<i32>} : memref<1x1x16xi32, #tpu.memory_space<vmem>>, vector<1x1x16xi32>,
    %28 = vector.broadcast %24 : vector<1x16xi32> to vector<16x16xi32>
    %29 = arith.cmpi eq, %16, %28 : vector<16x16xi32>
    %30 = arith.extui %29 : vector<16x16xi1> to vector<16x16xi32>
    %31 = arith.sitofp %30 : vector<16x16xi32> to vector<16x16xf32>
    %cst_14 = arith.constant dense<0.000000e+00> : vector<16x32xf32>
    %32 = tpu.matmul %31, %5, %cst_14 {dimension_numbers = #tpu.dot_dimension_numbers<[0], [0], [1], [1], [0, 1, 1, 1], [], []>} : vector<16x16xf32>, vector<16x32xf32>, vector<16x32xf32> -> vector<16x32xf32>
    %33 = arith.subf %4, %32 : vector<16x32xf32>
    %34 = arith.mulf %33, %33 : vector<16x32xf32>
    %35 = vector.shape_cast %34 : vector<16x32xf32> to vector<1x16x32xf32>
    %cst_15 = arith.constant dense<0.000000e+00> : vector<1xf32>
    %36 = vector.multi_reduction <add>, %35, %cst_15 [1, 2] : vector<1x16x32xf32> to vector<1xf32>
    %37 = vector.shape_cast %36 : vector<1xf32> to vector<1x1x1xf32>
    %38 = vector.extract %37[0, 0, 0] : f32 from vector<1x1x1xf32>
    %39 = tpu.iota {dimensions = array<i32: 0>} : vector<2x16xi32>
    %40 = tpu.iota {dimensions = array<i32: 1>} : vector<2x16xi32>
    %c8_i32 = arith.constant 8 : i32
    %41 = vector.broadcast %c8_i32 : i32 to vector<2x16xi32>
    %42 = arith.muli %39, %41 : vector<2x16xi32>
    %c7_i32 = arith.constant 7 : i32
    %43 = vector.broadcast %c7_i32 : i32 to vector<2x16xi32>
    %44 = arith.addi %42, %43 : vector<2x16xi32>
    %45 = arith.cmpi eq, %40, %44 : vector<2x16xi32>
    %46 = arith.extui %45 : vector<2x16xi1> to vector<2x16xi32>
    %47 = arith.sitofp %46 : vector<2x16xi32> to vector<2x16xf32>
    %cst_16 = arith.constant dense<0.000000e+00> : vector<2x32xf32>
    %48 = tpu.matmul %47, %32, %cst_16 {dimension_numbers = #tpu.dot_dimension_numbers<[1], [0], [0], [1], [0, 0, 1, 1], [], []>} : vector<2x16xf32>, vector<16x32xf32>, vector<2x32xf32> -> vector<2x32xf32>
    %c0_17 = arith.constant 0 : index
    %c0_18 = arith.constant 0 : index
    %c0_19 = arith.constant 0 : index
    %49 = vector.load %arg6[%c0_17, %c0_18, %c0_19] : memref<1x2x32xf32, #tpu.memory_space<vmem>>, vector<1x2x32xf32>
    %50 = vector.shape_cast %49 : vector<1x2x32xf32> to vector<2x32xf32>
    %51 = vector.shape_cast %48 : vector<2x32xf32> to vector<1x2x32xf32>
    tpu.vector_store %arg6[%c0_17, %c0_18, %c0_19], %51 {strides = array<i32>} : memref<1x2x32xf32, #tpu.memory_space<vmem>>, vector<1x2x32xf32>,
    %52 = arith.truncf %32 : vector<16x32xf32> to vector<16x32xbf16>
    %c0_20 = arith.constant 0 : index
    %c0_21 = arith.constant 0 : index
    %53 = vector.load %arg4[%c0_20, %c0_21] : memref<32x32xbf16, #tpu.memory_space<vmem>>, vector<32x32xbf16>
    %cst_22 = arith.constant dense<0.000000e+00> : vector<16x32xf32>
    %54 = tpu.matmul %52, %53, %cst_22 {dimension_numbers = #tpu.dot_dimension_numbers<[1], [0], [0], [1], [0, 0, 1, 1], [], []>} : vector<16x32xbf16>, vector<32x32xbf16>, vector<16x32xf32> -> vector<16x32xf32>
    %55 = arith.mulf %54, %54 : vector<16x32xf32>
    %cst_23 = arith.constant dense<0.000000e+00> : vector<16xf32>
    %56 = vector.multi_reduction <add>, %55, %cst_23 [1] : vector<16x32xf32> to vector<16xf32>
    %57 = vector.shape_cast %56 : vector<16xf32> to vector<16x1xf32>
    %58 = math.rsqrt %57 : vector<16x1xf32>
    %59 = vector.broadcast %58 : vector<16x1xf32> to vector<16x32xf32>
    %60 = arith.mulf %54, %59 : vector<16x32xf32>
    %61 = arith.mulf %1, %1 : vector<16x32xf32>
    %cst_24 = arith.constant dense<0.000000e+00> : vector<16xf32>
    %62 = vector.multi_reduction <add>, %61, %cst_24 [1] : vector<16x32xf32> to vector<16xf32>
    %63 = vector.shape_cast %62 : vector<16xf32> to vector<16x1xf32>
    %64 = math.rsqrt %63 : vector<16x1xf32>
    %65 = vector.broadcast %64 : vector<16x1xf32> to vector<16x32xf32>
    %66 = arith.mulf %1, %65 : vector<16x32xf32>
    %67 = arith.mulf %60, %66 : vector<16x32xf32>
    %cst_25 = arith.constant dense<0.000000e+00> : vector<16xf32>
    %68 = vector.multi_reduction <add>, %67, %cst_25 [1] : vector<16x32xf32> to vector<16xf32>
    %69 = vector.shape_cast %68 : vector<16xf32> to vector<16x1xf32>
    %cst_26 = arith.constant 1.000000e+00 : f32
    %70 = vector.broadcast %cst_26 : f32 to vector<16x1xf32>
    %71 = arith.subf %70, %69 : vector<16x1xf32>
    %72 = vector.shape_cast %71 : vector<16x1xf32> to vector<1x16x1xf32>
    %cst_27 = arith.constant dense<0.000000e+00> : vector<1xf32>
    %73 = vector.multi_reduction <add>, %72, %cst_27 [1, 2] : vector<1x16x1xf32> to vector<1xf32>
    %74 = vector.shape_cast %73 : vector<1xf32> to vector<1x1x1xf32>
    %75 = vector.extract %74[0, 0, 0] : f32 from vector<1x1x1xf32>
    %76 = tpu.iota {dimensions = array<i32: 1>} : vector<1x128xi32>
    %c0_i32 = arith.constant 0 : i32
    %77 = vector.broadcast %c0_i32 : i32 to vector<1x128xi32>
    %78 = arith.cmpi eq, %76, %77 : vector<1x128xi32>
    %cst_28 = arith.constant 0.000000e+00 : f32
    %79 = vector.broadcast %38 : f32 to vector<1x128xf32>
    %80 = vector.broadcast %cst_28 : f32 to vector<1x128xf32>
    %81 = arith.select %78, %79, %80 : vector<1x128xi1>, vector<1x128xf32>
    %c1_i32 = arith.constant 1 : i32
    %82 = vector.broadcast %c1_i32 : i32 to vector<1x128xi32>
    %83 = arith.cmpi eq, %76, %82 : vector<1x128xi32>
    %cst_29 = arith.constant 0.000000e+00 : f32
    %84 = vector.broadcast %75 : f32 to vector<1x128xf32>
    %85 = vector.broadcast %cst_29 : f32 to vector<1x128xf32>
    %86 = arith.select %83, %84, %85 : vector<1x128xi1>, vector<1x128xf32>
    %87 = arith.addf %81, %86 : vector<1x128xf32>
    %c0_30 = arith.constant 0 : index
    %c0_31 = arith.constant 0 : index
    %c0_32 = arith.constant 0 : index
    %88 = vector.load %arg7[%c0_30, %c0_31, %c0_32] : memref<1x1x128xf32, #tpu.memory_space<vmem>>, vector<1x1x128xf32>
    %89 = vector.shape_cast %88 : vector<1x1x128xf32> to vector<1x128xf32>
    %90 = vector.shape_cast %87 : vector<1x128xf32> to vector<1x1x128xf32>
    tpu.vector_store %arg7[%c0_30, %c0_31, %c0_32], %90 {strides = array<i32>} : memref<1x1x128xf32, #tpu.memory_space<vmem>>, vector<1x1x128xf32>,
    return
  }
  func.func @transform_0(%arg0: i32) -> (i32, i32, i32) {
    %c0_i32 = arith.constant 0 : i32
    %c0_i32_0 = arith.constant 0 : i32
    %c0_i32_1 = arith.constant 0 : i32
    return %arg0, %c0_i32, %c0_i32_0 : i32, i32, i32
  }
  func.func @transform_1(%arg0: i32) -> (i32, i32) {
    %c0_i32 = arith.constant 0 : i32
    %c0_i32_0 = arith.constant 0 : i32
    %c0_i32_1 = arith.constant 0 : i32
    return %c0_i32, %c0_i32_0 : i32, i32
  }
  func.func @transform_2(%arg0: i32) -> (i32, i32) {
    %c0_i32 = arith.constant 0 : i32
    %c0_i32_0 = arith.constant 0 : i32
    %c0_i32_1 = arith.constant 0 : i32
    return %c0_i32, %c0_i32_0 : i32, i32
  }
  func.func @transform_3(%arg0: i32) -> (i32, i32) {
    %c0_i32 = arith.constant 0 : i32
    %c0_i32_0 = arith.constant 0 : i32
    %c0_i32_1 = arith.constant 0 : i32
    return %c0_i32, %c0_i32_0 : i32, i32
  }
  func.func @transform_4(%arg0: i32) -> (i32, i32, i32) {
    %c0_i32 = arith.constant 0 : i32
    %c0_i32_0 = arith.constant 0 : i32
    %c0_i32_1 = arith.constant 0 : i32
    return %arg0, %c0_i32, %c0_i32_0 : i32, i32, i32
  }
  func.func @transform_5(%arg0: i32) -> (i32, i32, i32) {
    %c0_i32 = arith.constant 0 : i32
    %c0_i32_0 = arith.constant 0 : i32
    %c0_i32_1 = arith.constant 0 : i32
    return %arg0, %c0_i32, %c0_i32_0 : i32, i32, i32
  }
  func.func @transform_6(%arg0: i32) -> (i32, i32, i32) {
    %c0_i32 = arith.constant 0 : i32
    %c0_i32_0 = arith.constant 0 : i32
    %c0_i32_1 = arith.constant 0 : i32
    return %arg0, %c0_i32, %c0_i32_0 : i32, i32, i32
  }
}

</mosaic_0001>

<llo_original>
// kernel: tpu_custom_call.1
$region0: #{tpu_custom_call.1}
  #allocation0 [shape = 'u32[]', space=smem, size = 0x4, offset = 0x4, fixed_abs, tag = 'smem constant byte address 0x4 - core index']
  #allocation1 [shape = 'u32[144,128]{1,0:T(1,128)}', space=vmem, size = 0x12000, scoped, tag = 'internal scratch']
  %s0 = inlined_call_operand.hbm [shape: f32[2,8,32], index: 0, kind: input, shape index: {}]
  %s1 = inlined_call_operand.hbm [shape: bf16[32,32], index: 1, kind: input, shape index: {}]
  %s2 = inlined_call_operand.hbm [shape: f32[16,32], index: 2, kind: input, shape index: {}]
  %s3 = inlined_call_operand.hbm [shape: bf16[32,32], index: 3, kind: input, shape index: {}]
  %s4 = inlined_call_operand.hbm [shape: s32[1,1,16], index: 4, kind: output, shape index: {0}]
  %s5 = inlined_call_operand.hbm [shape: f32[1,2,32], index: 5, kind: output, shape index: {1}]
  %s6 = inlined_call_operand.hbm [shape: f32[1,1,128], index: 6, kind: output, shape index: {2}]
  %7 = xla_tuple %s4, %s5, %s6
  %s8 = sld [smem:[#allocation0]]
  $region58: #{tpu_custom_call.1} parent=0
    _
  %s10 = ssub.s32 1, %s8
  %s11 = scalar_select 0, %s10, %s8
  $region1: #{tpu_custom_call.1} parent=0
    #allocation2 [shape = 'u8[8192]{0}', space=vmem, size = 0x2000, scoped, tag = 'input window, operand 0, single buffered']
    #allocation3 [shape = 's32[1]{0}', space=sflag, size = 0x4, scoped, tag = 'scoped memory for tpu_custom_call.1']
    #allocation4 [shape = 's32[1]{0}', space=sflag, size = 0x4, scoped, tag = 'scoped memory for tpu_custom_call.1']
    #allocation5 [shape = 'u8[8192]{0}', space=vmem, size = 0x2000, scoped, tag = 'input window, operand 1, single buffered']
    #allocation6 [shape = 's32[1]{0}', space=sflag, size = 0x4, scoped, tag = 'scoped memory for tpu_custom_call.1']
    #allocation7 [shape = 'u8[8192]{0}', space=vmem, size = 0x2000, scoped, tag = 'input window, operand 2, single buffered']
    #allocation8 [shape = 'u8[8192]{0}', space=vmem, size = 0x2000, scoped, tag = 'input window, operand 3, single buffered']
    #allocation9 [shape = 's32[1]{0}', space=sflag, size = 0x4, scoped, tag = 'scoped memory for tpu_custom_call.1']
    #allocation10 [shape = 'u8[512]{0}', space=vmem, size = 0x400, scoped, tag = 'output window, operand 0, single buffered']
    #allocation11 [shape = 'u8[1024]{0}', space=vmem, size = 0x400, scoped, tag = 'output window, operand 1, single buffered']
    #allocation12 [shape = 's32[1]{0}', space=sflag, size = 0x4, scoped, tag = 'scoped memory for tpu_custom_call.1']
    #allocation13 [shape = 'u8[512]{0}', space=vmem, size = 0x400, scoped, tag = 'output window, operand 2, single buffered']
    %12 = vsyncpa [#allocation3], 0
    %13 = vsyncpa [#allocation6], 0
    %14 = vsyncpa [#allocation9], 0
    %15 = vsyncpa [#allocation4], 0
    %16 = vsyncpa [#allocation12], 0
    // Predicated region
    $region2: #{tpu_custom_call.1} parent=1 // pred_check
      _
    $region3: #{tpu_custom_call.1} parent=1 // pred_check_branch
      %18 = sbr.rel (0) target = $region5
    $region4: #{tpu_custom_call.1} parent=1 // pred_region
      %s20 = ssub.s32 256, 256
      %21 = vsyncadd [#allocation3], %s20
      %s22 = sshll.u32 [#allocation2], 4
      %s23 = int_to_ptr.vmem [resolvable:$true] %s22
      %28 = dma.hbm_to_vmem [thread:$0]  %s0, 256, %s23, [#allocation3], 128, 128, 8
    $region5: #{tpu_custom_call.1} parent=1 // pred_fallthru
      _
    // Predicated region
    $region6: #{tpu_custom_call.1} parent=1 // pred_check
      _
    $region7: #{tpu_custom_call.1} parent=1 // pred_check_branch
      %30 = sbr.rel (0) target = $region9
    $region8: #{tpu_custom_call.1} parent=1 // pred_region
      %s32 = ssub.s32 256, 256
      %33 = vsyncadd [#allocation6], %s32
      %s34 = sshll.u32 [#allocation5], 4
      %s35 = int_to_ptr.vmem [resolvable:$true] %s34
      %40 = dma.hbm_to_vmem [thread:$0]  %s1, 256, %s35, [#allocation6], 64, 64, 4
    $region9: #{tpu_custom_call.1} parent=1 // pred_fallthru
      _
    // Predicated region
    $region10: #{tpu_custom_call.1} parent=1 // pred_check
      _
    $region11: #{tpu_custom_call.1} parent=1 // pred_check_branch
      %42 = sbr.rel (0) target = $region13
    $region12: #{tpu_custom_call.1} parent=1 // pred_region
      %s44 = ssub.s32 256, 256
      %45 = vsyncadd [#allocation6], %s44
      %s46 = sshll.u32 [#allocation7], 4
      %s47 = int_to_ptr.vmem [resolvable:$true] %s46
      %52 = dma.hbm_to_vmem [thread:$0]  %s2, 256, %s47, [#allocation6], 128, 128, 8
    $region13: #{tpu_custom_call.1} parent=1 // pred_fallthru
      _
    // Predicated region
    $region14: #{tpu_custom_call.1} parent=1 // pred_check
      _
    $region15: #{tpu_custom_call.1} parent=1 // pred_check_branch
      %54 = sbr.rel (0) target = $region17
    $region16: #{tpu_custom_call.1} parent=1 // pred_region
      %s56 = ssub.s32 256, 256
      %57 = vsyncadd [#allocation9], %s56
      %s58 = sshll.u32 [#allocation8], 4
      %s59 = int_to_ptr.vmem [resolvable:$true] %s58
      %64 = dma.hbm_to_vmem [thread:$0]  %s3, 256, %s59, [#allocation9], 64, 64, 4
    $region17: #{tpu_custom_call.1} parent=1 // pred_fallthru
      _
    // Predicated region
    $region18: #{tpu_custom_call.1} parent=1 // pred_check
      _
    $region19: #{tpu_custom_call.1} parent=1 // pred_check_branch
      %66 = sbr.rel (0) target = $region21
    $region20: #{tpu_custom_call.1} parent=1 // pred_region
      %67 = dma.done [#allocation3], 256
    $region21: #{tpu_custom_call.1} parent=1 // pred_fallthru
      _
    // Predicated region
    $region22: #{tpu_custom_call.1} parent=1 // pred_check
      _
    $region23: #{tpu_custom_call.1} parent=1 // pred_check_branch
      %69 = sbr.rel (0) target = $region25
    $region24: #{tpu_custom_call.1} parent=1 // pred_region
      %70 = dma.done [#allocation6], 256
    $region25: #{tpu_custom_call.1} parent=1 // pred_fallthru
      _
    // Predicated region
    $region26: #{tpu_custom_call.1} parent=1 // pred_check
      _
    $region27: #{tpu_custom_call.1} parent=1 // pred_check_branch
      %72 = sbr.rel (0) target = $region29
    $region28: #{tpu_custom_call.1} parent=1 // pred_region
      %73 = dma.done [#allocation6], 256
    $region29: #{tpu_custom_call.1} parent=1 // pred_fallthru
      _
    // Predicated region
    $region30: #{tpu_custom_call.1} parent=1 // pred_check
      _
    $region31: #{tpu_custom_call.1} parent=1 // pred_check_branch
      %75 = sbr.rel (0) target = $region33
    $region32: #{tpu_custom_call.1} parent=1 // pred_region
      %76 = dma.done [#allocation9], 256
    $region33: #{tpu_custom_call.1} parent=1 // pred_fallthru
      _
    %v78 = vld [vmem:[#allocation2] sm:$0xff]
    %v79 = vld [vmem:[#allocation2 + $0x8] sm:$0xff]
    %v80 = vpack.c.bf16 %v79, %v78
    %v81 = vld [vmem:[#allocation5] sm:$0xf]
    %v82 = vld [vmem:[#allocation5 + $0x4] sm:$0xf]
    %v83 = vld [vmem:[#allocation5 + $0x8] sm:$0xf]
    %v84 = vld [vmem:[#allocation5 + $0xc] sm:$0xf]
    %v89 = vunpack.c.l.b16 %v81
    %v90 = vunpack.c.l.b16 %v82
    %v91 = vunpack.c.l.b16 %v83
    %v92 = vunpack.c.l.b16 %v84
    %v93 = vpack.c.b16 %v90, %v89
    %v94 = vpack.c.b16 %v92, %v91
    %vm97 = vcmask 261120
    %v99 = vsel %vm97, %v80, 0
    %101 = vmatprep.subr.bf16.mxu0 0
    %102 = vmatpush1.bf16.msra.mxu0 0
    %103 = vmatprep.subr.bf16.mxu0 0
    %104 = vmatpush1.bf16.msra.mxu0 0
    %105 = vmatprep.subr.bf16.mxu0 0
    %106 = vmatpush1.bf16.msra.mxu0 0
    %107 = vmatprep.subr.bf16.mxu0 0
    %108 = vmatpush1.bf16.msra.mxu0 0
    %109 = vmatprep.subr.bf16.mxu0 0
    %110 = vmatpush1.bf16.msra.mxu0 0
    %111 = vmatprep.subr.bf16.mxu0 0
    %112 = vmatpush1.bf16.msra.mxu0 0
    %113 = vmatprep.subr.bf16.mxu0 0
    %114 = vmatpush1.bf16.msra.mxu0 %v94
    %115 = vmatprep.subr.bf16.mxu0 0
    %116 = vmatpush1.bf16.msra.mxu0 %v93
    %117 = vmatprep.subr.bf16.mxu0 0
    %118 = vmatpush2.bf16.msra.mxu0 0
    %119 = vmatprep.subr.bf16.mxu0 0
    %120 = vmatpush2.bf16.msra.mxu0 0
    %121 = vmatprep.subr.bf16.mxu0 0
    %122 = vmatpush2.bf16.msra.mxu0 0
    %123 = vmatprep.subr.bf16.mxu0 0
    %124 = vmatpush2.bf16.msra.mxu0 0
    %125 = vmatprep.subr.bf16.mxu0 0
    %126 = vmatpush2.bf16.msra.mxu0 0
    %127 = vmatprep.subr.bf16.mxu0 0
    %128 = vmatpush2.bf16.msra.mxu0 0
    %129 = vmatprep.subr.bf16.mxu0 0
    %130 = vmatpush2.bf16.msra.mxu0 0
    %131 = vmatprep.subr.bf16.mxu0 0
    %132 = vmatpush2.bf16.msra.mxu0 0
    %133 = vmatprep.mubr.bf16.mxu0 0
    %134 = vmatmul.mubr.bf16.gmra.mxu0 %v99
    %v135 = vpop.f32.mrf.mxu0
    %v136 = vadd.f32 0.0, %v135
    %v137 = vpop.f32.mrf.mxu0
    %v138 = vpop.f32.mrf.mxu0
    %v139 = vadd.f32 0.0, %v138
    %v140 = vpop.f32.mrf.mxu0
    %141 = vdwg.mxu0
    %v142 = vld [vmem:[#allocation7] sm:$0xff]
    %v143 = vld [vmem:[#allocation7 + $0x8] sm:$0xff]
    %v144 = vmul.f32 %v142, %v142
    %v145 = vmul.f32 %v143, %v143
    %v146 = vsel %vm97, %v144, 0.0
    %147 = vadd.xlane.f32.xlu0 %v146
    %v148 = vpop.xlane.xlu0 %147
    %v149 = vsel %vm97, %v145, 0.0
    %150 = vadd.xlane.f32.xlu0 %v149
    %v151 = vpop.xlane.xlu0 %150
    %v152 = vpack.c.bf16 %v143, %v142
    %v153 = vpack.c.bf16 %v139, %v136
    %v155 = vsel %vm97, %v152, 0
    %v158 = vsel %vm97, %v153, 0
    %160 = vmatprep.subr.bf16.mxu0 0
    %161 = vmatpush1.bf16.xpose.msra.mxu0 0
    %162 = vmatprep.subr.bf16.mxu0 0
    %163 = vmatpush1.bf16.xpose.msra.mxu0 0
    %164 = vmatprep.subr.bf16.mxu0 0
    %165 = vmatpush1.bf16.xpose.msra.mxu0 0
    %166 = vmatprep.subr.bf16.mxu0 0
    %167 = vmatpush1.bf16.xpose.msra.mxu0 0
    %168 = vmatprep.subr.bf16.mxu0 0
    %169 = vmatpush1.bf16.xpose.msra.mxu0 0
    %170 = vmatprep.subr.bf16.mxu0 0
    %171 = vmatpush1.bf16.xpose.msra.mxu0 0
    %172 = vmatprep.subr.bf16.mxu0 0
    %173 = vmatpush1.bf16.xpose.msra.mxu0 0
    %174 = vmatprep.subr.bf16.mxu0 0
    %175 = vmatpush1.bf16.xpose.msra.mxu0 %v158
    %176 = vmatprep.subr.bf16.mxu0 0
    %177 = vmatpush2.bf16.xpose.msra.mxu0 0
    %178 = vmatprep.subr.bf16.mxu0 0
    %179 = vmatpush2.bf16.xpose.msra.mxu0 0
    %180 = vmatprep.subr.bf16.mxu0 0
    %181 = vmatpush2.bf16.xpose.msra.mxu0 0
    %182 = vmatprep.subr.bf16.mxu0 0
    %183 = vmatpush2.bf16.xpose.msra.mxu0 0
    %184 = vmatprep.subr.bf16.mxu0 0
    %185 = vmatpush2.bf16.xpose.msra.mxu0 0
    %186 = vmatprep.subr.bf16.mxu0 0
    %187 = vmatpush2.bf16.xpose.msra.mxu0 0
    %188 = vmatprep.subr.bf16.mxu0 0
    %189 = vmatpush2.bf16.xpose.msra.mxu0 0
    %190 = vmatprep.subr.bf16.mxu0 0
    %191 = vmatpush2.bf16.xpose.msra.mxu0 0
    %192 = vmatprep.mubr.bf16.mxu0 0
    %193 = vmatmul.mubr.bf16.gmra.mxu0 %v155
    %v194 = vpop.f32.mrf.mxu0
    %v195 = vadd.f32 0.0, %v194
    %v196 = vpop.f32.mrf.mxu0
    %v197 = vpop.f32.mrf.mxu0
    %v198 = vadd.f32 0.0, %v197
    %v199 = vpop.f32.mrf.mxu0
    %200 = vdwg.mxu0
    %v201 = vmul.f32 %v195, 2.0
    %v202 = vmul.f32 %v198, 2.0
    %v203 = vsub.f32 %v148, %v201
    %v204 = vsub.f32 %v151, %v202
    %v205 = vlaneseq
    %v206 = vshrl.u32 %v205, 7
    %v207 = vadd.s32 %v206, 8
    %vm208 = vcmask 130048
    %v209 = vsel %vm208, %v203, inf
    %v210 = vsel %vm208, %v204, inf
    %v211 = vmin.f32 %v209, %v210
    %v212 = vrot.slane %v211, 4
    %v213 = vmin.f32 %v211, %v212
    %v214 = vrot.slane %v213, 2
    %v215 = vmin.f32 %v213, %v214
    %v216 = vrot.slane %v215, 1
    %v217 = vmin.f32 %v215, %v216
    %vm218 = vcmp.le.f32.partialorder %v203, %v217
    %vm219 = vcmp.le.f32.partialorder %v204, %v217
    %v220 = vsel %vm218, %v206, 16
    %v221 = vsel %vm219, %v207, 16
    %v222 = vsel %vm208, %v220, 2147483647
    %v223 = vsel %vm208, %v221, 2147483647
    %vm224 = vcmp.lt.s32.totalorder %v222, %v223
    %v225 = vsel %vm224, %v222, %v223
    %v226 = vrot.slane %v225, 4
    %vm227 = vcmp.lt.s32.totalorder %v225, %v226
    %v228 = vsel %vm227, %v225, %v226
    %v229 = vrot.slane %v228, 2
    %vm230 = vcmp.lt.s32.totalorder %v228, %v229
    %v231 = vsel %vm230, %v228, %v229
    %v232 = vrot.slane %v231, 1
    %vm233 = vcmp.lt.s32.totalorder %v231, %v232
    %v234 = vsel %vm233, %v231, %v232
    %vm235 = vcmask 122880
    %236 = vst.msk [vmem:[#allocation10] sm:$0x1] %vm235, %v234
    %vm237 = vcmp.eq.s32.totalorder %v206, %v234
    %vm238 = vcmp.eq.s32.totalorder %v207, %v234
    %v239 = vsel %vm237, 1, 0
    %v240 = vsel %vm238, 1, 0
    %v241 = vcvt.s32.f32 %v239
    %v242 = vcvt.s32.f32 %v240
    %243 = vxpose.xlu0.b32.start [1/16] %v241, 128
    %244 = vxpose.xlu0.b32.cont [2/16] %v242, 128
    %245 = vxpose.xlu0.b32.cont [3/16] 0.0, 128
    %246 = vxpose.xlu0.b32.cont [4/16] 0.0, 128
    %247 = vxpose.xlu0.b32.cont [5/16] 0.0, 128
    %248 = vxpose.xlu0.b32.cont [6/16] 0.0, 128
    %249 = vxpose.xlu0.b32.cont [7/16] 0.0, 128
    %250 = vxpose.xlu0.b32.cont [8/16] 0.0, 128
    %251 = vxpose.xlu0.b32.cont [9/16] 0.0, 128
    %252 = vxpose.xlu0.b32.cont [10/16] 0.0, 128
    %253 = vxpose.xlu0.b32.cont [11/16] 0.0, 128
    %254 = vxpose.xlu0.b32.cont [12/16] 0.0, 128
    %255 = vxpose.xlu0.b32.cont [13/16] 0.0, 128
    %256 = vxpose.xlu0.b32.cont [14/16] 0.0, 128
    %257 = vxpose.xlu0.b32.cont [15/16] 0.0, 128
    %258 = vxpose.xlu0.b32.end [16/16] 0.0, 128
    %v259 = vpop.trf.xlu0
    %v260 = vpop.trf.xlu0
    %v261 = vpop.trf.xlu0
    %v262 = vpop.trf.xlu0
    %v263 = vpop.trf.xlu0
    %v264 = vpop.trf.xlu0
    %v265 = vpop.trf.xlu0
    %v266 = vpop.trf.xlu0
    %v267 = vpop.trf.xlu0
    %v268 = vpop.trf.xlu0
    %v269 = vpop.trf.xlu0
    %v270 = vpop.trf.xlu0
    %v271 = vpop.trf.xlu0
    %v272 = vpop.trf.xlu0
    %v273 = vpop.trf.xlu0
    %v274 = vpop.trf.xlu0
    %v276 = vsel %vm208, %v259, 0
    %v279 = vsel %vm208, %v260, 0
    %281 = vmatprep.subr.mxu0 0.0
    %282 = vmatpush1.msra.mxu0 0.0
    %283 = vmatprep.subr.mxu0 0.0
    %284 = vmatpush1.msra.mxu0 0.0
    %285 = vmatprep.subr.mxu0 0.0
    %286 = vmatpush1.msra.mxu0 0.0
    %287 = vmatprep.subr.mxu0 0.0
    %288 = vmatpush1.msra.mxu0 0.0
    %289 = vmatprep.subr.mxu0 0.0
    %290 = vmatpush1.msra.mxu0 0.0
    %291 = vmatprep.subr.mxu0 0.0
    %292 = vmatpush1.msra.mxu0 0.0
    %293 = vmatprep.subr.mxu0 0.0
    %294 = vmatpush1.msra.mxu0 0.0
    %295 = vmatprep.subr.mxu0 0.0
    %296 = vmatpush1.msra.mxu0 0.0
    %297 = vmatprep.subr.mxu0 0.0
    %298 = vmatpush1.msra.mxu0 0.0
    %299 = vmatprep.subr.mxu0 0.0
    %300 = vmatpush1.msra.mxu0 0.0
    %301 = vmatprep.subr.mxu0 0.0
    %302 = vmatpush1.msra.mxu0 0.0
    %303 = vmatprep.subr.mxu0 0.0
    %304 = vmatpush1.msra.mxu0 0.0
    %305 = vmatprep.subr.mxu0 0.0
    %306 = vmatpush1.msra.mxu0 0.0
    %307 = vmatprep.subr.mxu0 0.0
    %308 = vmatpush1.msra.mxu0 0.0
    %309 = vmatprep.subr.mxu0 0.0
    %310 = vmatpush1.msra.mxu0 %v143
    %311 = vmatprep.subr.mxu0 0.0
    %312 = vmatpush1.msra.mxu0 %v142
    %313 = vmatprep.subr.mxu0 0.0
    %314 = vmatpush2.msra.mxu0 0.0
    %315 = vmatprep.subr.mxu0 0.0
    %316 = vmatpush2.msra.mxu0 0.0
    %317 = vmatprep.subr.mxu0 0.0
    %318 = vmatpush2.msra.mxu0 0.0
    %319 = vmatprep.subr.mxu0 0.0
    %320 = vmatpush2.msra.mxu0 0.0
    %321 = vmatprep.subr.mxu0 0.0
    %322 = vmatpush2.msra.mxu0 0.0
    %323 = vmatprep.subr.mxu0 0.0
    %324 = vmatpush2.msra.mxu0 0.0
    %325 = vmatprep.subr.mxu0 0.0
    %326 = vmatpush2.msra.mxu0 0.0
    %327 = vmatprep.subr.mxu0 0.0
    %328 = vmatpush2.msra.mxu0 0.0
    %329 = vmatprep.subr.mxu0 0.0
    %330 = vmatpush2.msra.mxu0 0.0
    %331 = vmatprep.subr.mxu0 0.0
    %332 = vmatpush2.msra.mxu0 0.0
    %333 = vmatprep.subr.mxu0 0.0
    %334 = vmatpush2.msra.mxu0 0.0
    %335 = vmatprep.subr.mxu0 0.0
    %336 = vmatpush2.msra.mxu0 0.0
    %337 = vmatprep.subr.mxu0 0.0
    %338 = vmatpush2.msra.mxu0 0.0
    %339 = vmatprep.subr.mxu0 0.0
    %340 = vmatpush2.msra.mxu0 0.0
    %341 = vmatprep.subr.mxu0 0.0
    %342 = vmatpush2.msra.mxu0 0.0
    %343 = vmatprep.subr.mxu0 0.0
    %344 = vmatpush2.msra.mxu0 0.0
    %345 = vmatprep.mubr.f32.mxu0 0.0
    %346 = vmatmul.mubr.f32.gmra.mxu0 %v276
    %v347 = vpop.f32.mrf.mxu0
    %v348 = vadd.f32 0.0, %v347
    %v349 = vpop.f32.mrf.mxu0
    %350 = vmatprep.mubr.f32.mxu0 0.0
    %351 = vmatmul.mubr.f32.gmra.mxu0 %v279
    %v352 = vpop.f32.mrf.mxu0
    %v353 = vadd.f32 0.0, %v352
    %v354 = vpop.f32.mrf.mxu0
    %355 = vdwg.mxu0
    %v356 = vsub.f32 %v136, %v348
    %v357 = vsub.f32 %v139, %v353
    %v358 = vmul.f32 %v356, %v356
    %v359 = vmul.f32 %v357, %v357
    %v360 = vsel %vm97, %v358, 0.0
    %v361 = vsel %vm97, %v359, 0.0
    %v362 = vadd.f32 %v360, %v361
    %363 = vadd.xlane.f32.xlu0 %v362
    %v364 = vpop.xlane.xlu0 %363
    %v365 = vrot.slane %v364, 4
    %v366 = vadd.f32 %v364, %v365
    %v367 = vrot.slane %v366, 2
    %v368 = vadd.f32 %v366, %v367
    %v369 = vrot.slane %v368, 1
    %v370 = vadd.f32 %v368, %v369
    %s371 = vtos %v370
    %v372 = vlaneseq
    %v373 = vand.u32 %v372, 127
    %v374 = vmul.u32 %v206, 8
    %v375 = vadd.s32 %v374, 7
    %vm376 = vcmp.eq.s32.totalorder %v373, %v375
    %v377 = vsel %vm376, 1, 0
    %v378 = vcvt.s32.f32 %v377
    %v380 = vsel %vm208, %v378, 0
    %382 = vmatprep.subr.mxu0 0.0
    %383 = vmatpush1.msra.mxu0 0.0
    %384 = vmatprep.subr.mxu0 0.0
    %385 = vmatpush1.msra.mxu0 0.0
    %386 = vmatprep.subr.mxu0 0.0
    %387 = vmatpush1.msra.mxu0 0.0
    %388 = vmatprep.subr.mxu0 0.0
    %389 = vmatpush1.msra.mxu0 0.0
    %390 = vmatprep.subr.mxu0 0.0
    %391 = vmatpush1.msra.mxu0 0.0
    %392 = vmatprep.subr.mxu0 0.0
    %393 = vmatpush1.msra.mxu0 0.0
    %394 = vmatprep.subr.mxu0 0.0
    %395 = vmatpush1.msra.mxu0 0.0
    %396 = vmatprep.subr.mxu0 0.0
    %397 = vmatpush1.msra.mxu0 0.0
    %398 = vmatprep.subr.mxu0 0.0
    %399 = vmatpush1.msra.mxu0 0.0
    %400 = vmatprep.subr.mxu0 0.0
    %401 = vmatpush1.msra.mxu0 0.0
    %402 = vmatprep.subr.mxu0 0.0
    %403 = vmatpush1.msra.mxu0 0.0
    %404 = vmatprep.subr.mxu0 0.0
    %405 = vmatpush1.msra.mxu0 0.0
    %406 = vmatprep.subr.mxu0 0.0
    %407 = vmatpush1.msra.mxu0 0.0
    %408 = vmatprep.subr.mxu0 0.0
    %409 = vmatpush1.msra.mxu0 0.0
    %410 = vmatprep.subr.mxu0 0.0
    %411 = vmatpush1.msra.mxu0 %v353
    %412 = vmatprep.subr.mxu0 0.0
    %413 = vmatpush1.msra.mxu0 %v348
    %414 = vmatprep.subr.mxu0 0.0
    %415 = vmatpush2.msra.mxu0 0.0
    %416 = vmatprep.subr.mxu0 0.0
    %417 = vmatpush2.msra.mxu0 0.0
    %418 = vmatprep.subr.mxu0 0.0
    %419 = vmatpush2.msra.mxu0 0.0
    %420 = vmatprep.subr.mxu0 0.0
    %421 = vmatpush2.msra.mxu0 0.0
    %422 = vmatprep.subr.mxu0 0.0
    %423 = vmatpush2.msra.mxu0 0.0
    %424 = vmatprep.subr.mxu0 0.0
    %425 = vmatpush2.msra.mxu0 0.0
    %426 = vmatprep.subr.mxu0 0.0
    %427 = vmatpush2.msra.mxu0 0.0
    %428 = vmatprep.subr.mxu0 0.0
    %429 = vmatpush2.msra.mxu0 0.0
    %430 = vmatprep.subr.mxu0 0.0
    %431 = vmatpush2.msra.mxu0 0.0
    %432 = vmatprep.subr.mxu0 0.0
    %433 = vmatpush2.msra.mxu0 0.0
    %434 = vmatprep.subr.mxu0 0.0
    %435 = vmatpush2.msra.mxu0 0.0
    %436 = vmatprep.subr.mxu0 0.0
    %437 = vmatpush2.msra.mxu0 0.0
    %438 = vmatprep.subr.mxu0 0.0
    %439 = vmatpush2.msra.mxu0 0.0
    %440 = vmatprep.subr.mxu0 0.0
    %441 = vmatpush2.msra.mxu0 0.0
    %442 = vmatprep.subr.mxu0 0.0
    %443 = vmatpush2.msra.mxu0 0.0
    %444 = vmatprep.subr.mxu0 0.0
    %445 = vmatpush2.msra.mxu0 0.0
    %446 = vmatprep.mubr.f32.mxu0 0.0
    %447 = vmatmul.mubr.f32.gmra.mxu0 %v380
    %v448 = vpop.f32.mrf.mxu0
    %v449 = vadd.f32 0.0, %v448
    %v450 = vpop.f32.mrf.mxu0
    %451 = vdwg.mxu0
    %vm452 = vcmask 254976
    %453 = vst.msk [vmem:[#allocation11] sm:$0x3] %vm452, %v449
    %v454 = vpack.c.bf16 %v353, %v348
    %v455 = vld [vmem:[#allocation8] sm:$0xf]
    %v456 = vld [vmem:[#allocation8 + $0x4] sm:$0xf]
    %v457 = vld [vmem:[#allocation8 + $0x8] sm:$0xf]
    %v458 = vld [vmem:[#allocation8 + $0xc] sm:$0xf]
    %v463 = vunpack.c.l.b16 %v455
    %v464 = vunpack.c.l.b16 %v456
    %v465 = vunpack.c.l.b16 %v457
    %v466 = vunpack.c.l.b16 %v458
    %v467 = vpack.c.b16 %v464, %v463
    %v468 = vpack.c.b16 %v466, %v465
    %v472 = vsel %vm97, %v454, 0
    %474 = vmatprep.subr.bf16.mxu0 0
    %475 = vmatpush1.bf16.msra.mxu0 0
    %476 = vmatprep.subr.bf16.mxu0 0
    %477 = vmatpush1.bf16.msra.mxu0 0
    %478 = vmatprep.subr.bf16.mxu0 0
    %479 = vmatpush1.bf16.msra.mxu0 0
    %480 = vmatprep.subr.bf16.mxu0 0
    %481 = vmatpush1.bf16.msra.mxu0 0
    %482 = vmatprep.subr.bf16.mxu0 0
    %483 = vmatpush1.bf16.msra.mxu0 0
    %484 = vmatprep.subr.bf16.mxu0 0
    %485 = vmatpush1.bf16.msra.mxu0 0
    %486 = vmatprep.subr.bf16.mxu0 0
    %487 = vmatpush1.bf16.msra.mxu0 %v468
    %488 = vmatprep.subr.bf16.mxu0 0
    %489 = vmatpush1.bf16.msra.mxu0 %v467
    %490 = vmatprep.subr.bf16.mxu0 0
    %491 = vmatpush2.bf16.msra.mxu0 0
    %492 = vmatprep.subr.bf16.mxu0 0
    %493 = vmatpush2.bf16.msra.mxu0 0
    %494 = vmatprep.subr.bf16.mxu0 0
    %495 = vmatpush2.bf16.msra.mxu0 0
    %496 = vmatprep.subr.bf16.mxu0 0
    %497 = vmatpush2.bf16.msra.mxu0 0
    %498 = vmatprep.subr.bf16.mxu0 0
    %499 = vmatpush2.bf16.msra.mxu0 0
    %500 = vmatprep.subr.bf16.mxu0 0
    %501 = vmatpush2.bf16.msra.mxu0 0
    %502 = vmatprep.subr.bf16.mxu0 0
    %503 = vmatpush2.bf16.msra.mxu0 0
    %504 = vmatprep.subr.bf16.mxu0 0
    %505 = vmatpush2.bf16.msra.mxu0 0
    %506 = vmatprep.mubr.bf16.mxu0 0
    %507 = vmatmul.mubr.bf16.gmra.mxu0 %v472
    %v508 = vpop.f32.mrf.mxu0
    %v509 = vadd.f32 0.0, %v508
    %v510 = vpop.f32.mrf.mxu0
    %v511 = vpop.f32.mrf.mxu0
    %v512 = vadd.f32 0.0, %v511
    %v513 = vpop.f32.mrf.mxu0
    %514 = vdwg.mxu0
    %v515 = vmul.f32 %v509, %v509
    %v516 = vmul.f32 %v512, %v512
    %v517 = vsel %vm97, %v515, 0.0
    %518 = vadd.xlane.f32.xlu0 %v517
    %v519 = vpop.xlane.xlu0 %518
    %v520 = vsel %vm97, %v516, 0.0
    %521 = vadd.xlane.f32.xlu0 %v520
    %v522 = vpop.xlane.xlu0 %521
    %v523 = vrsqrt.pop %v519
    %v524 = vrsqrt.pop %v522
    %v525 = vmul.f32 %v509, %v523
    %v526 = vmul.f32 %v512, %v524
    %v527 = vmul.f32 %v78, %v78
    %v528 = vmul.f32 %v79, %v79
    %v529 = vsel %vm97, %v527, 0.0
    %530 = vadd.xlane.f32.xlu0 %v529
    %v531 = vpop.xlane.xlu0 %530
    %v532 = vsel %vm97, %v528, 0.0
    %533 = vadd.xlane.f32.xlu0 %v532
    %v534 = vpop.xlane.xlu0 %533
    %v535 = vrsqrt.pop %v531
    %v536 = vrsqrt.pop %v534
    %v537 = vmul.f32 %v78, %v535
    %v538 = vmul.f32 %v79, %v536
    %v539 = vmul.f32 %v525, %v537
    %v540 = vmul.f32 %v526, %v538
    %v541 = vsel %vm97, %v539, 0.0
    %542 = vadd.xlane.f32.xlu0 %v541
    %v543 = vpop.xlane.xlu0 %542
    %v544 = vsel %vm97, %v540, 0.0
    %545 = vadd.xlane.f32.xlu0 %v544
    %v546 = vpop.xlane.xlu0 %545
    %v547 = vsub.f32 1.0, %v543
    %v548 = vsub.f32 1.0, %v546
    %vm549 = vcmask 7168
    %v550 = vsel %vm549, %v547, 0.0
    %v551 = vsel %vm549, %v548, 0.0
    %v552 = vadd.f32 %v550, %v551
    %553 = vadd.xlane.f32.xlu0 %v552
    %v554 = vpop.xlane.xlu0 %553
    %v555 = vrot.slane %v554, 4
    %v556 = vadd.f32 %v554, %v555
    %v557 = vrot.slane %v556, 2
    %v558 = vadd.f32 %v556, %v557
    %v559 = vrot.slane %v558, 1
    %v560 = vadd.f32 %v558, %v559
    %s561 = vtos %v560
    %vm562 = vcmp.eq.s32.totalorder %v373, 0
    %v563 = vstv %s371
    %v564 = vsel %vm562, %v563, 0.0
    %vm565 = vcmp.eq.s32.totalorder %v373, 1
    %v566 = vstv %s561
    %v567 = vsel %vm565, %v566, 0.0
    %v568 = vadd.f32 %v564, %v567
    %569 = vst [vmem:[#allocation13] sm:$0x1] %v568
    // Predicated region
    $region34: #{tpu_custom_call.1} parent=1 // pred_check
      _
    $region35: #{tpu_custom_call.1} parent=1 // pred_check_branch
      %571 = sbr.rel (0) target = $region37
    $region36: #{tpu_custom_call.1} parent=1 // pred_region
      %s573 = ssub.s32 16, 16
      %574 = vsyncadd [#allocation4], %s573
      %s576 = sshll.u32 [#allocation10], 4
      %s577 = int_to_ptr.vmem [resolvable:$true] %s576
      %579 = dma.vmem_to_hbm [thread:$0]  %s577, 16, %s4, [#allocation4]
    $region37: #{tpu_custom_call.1} parent=1 // pred_fallthru
      _
    // Predicated region
    $region38: #{tpu_custom_call.1} parent=1 // pred_check
      _
    $region39: #{tpu_custom_call.1} parent=1 // pred_check_branch
      %581 = sbr.rel (0) target = $region41
    $region40: #{tpu_custom_call.1} parent=1 // pred_region
      %s583 = ssub.s32 32, 32
      %584 = vsyncadd [#allocation12], %s583
      %s586 = sshll.u32 [#allocation11], 4
      %s587 = int_to_ptr.vmem [resolvable:$true] %s586
      %589 = dma.vmem_to_hbm [thread:$0]  %s587, 32, %s5, [#allocation12]
    $region41: #{tpu_custom_call.1} parent=1 // pred_fallthru
      _
    // Predicated region
    $region42: #{tpu_custom_call.1} parent=1 // pred_check
      _
    $region43: #{tpu_custom_call.1} parent=1 // pred_check_branch
      %591 = sbr.rel (0) target = $region45
    $region44: #{tpu_custom_call.1} parent=1 // pred_region
      %s593 = ssub.s32 16, 16
      %594 = vsyncadd [#allocation12], %s593
      %s596 = sshll.u32 [#allocation13], 4
      %s597 = int_to_ptr.vmem [resolvable:$true] %s596
      %599 = dma.vmem_to_hbm [thread:$0]  %s597, 16, %s6, [#allocation12]
    $region45: #{tpu_custom_call.1} parent=1 // pred_fallthru
      _
    // Predicated region
    $region46: #{tpu_custom_call.1} parent=1 // pred_check
      _
    $region47: #{tpu_custom_call.1} parent=1 // pred_check_branch
      %601 = sbr.rel (0) target = $region49
    $region48: #{tpu_custom_call.1} parent=1 // pred_region
      %602 = dma.done [#allocation4], 16
    $region49: #{tpu_custom_call.1} parent=1 // pred_fallthru
      _
    // Predicated region
    $region50: #{tpu_custom_call.1} parent=1 // pred_check
      _
    $region51: #{tpu_custom_call.1} parent=1 // pred_check_branch
      %604 = sbr.rel (0) target = $region53
    $region52: #{tpu_custom_call.1} parent=1 // pred_region
      %605 = dma.done [#allocation12], 32
    $region53: #{tpu_custom_call.1} parent=1 // pred_fallthru
      _
    // Predicated region
    $region54: #{tpu_custom_call.1} parent=1 // pred_check
      _
    $region55: #{tpu_custom_call.1} parent=1 // pred_check_branch
      %607 = sbr.rel (0) target = $region57
    $region56: #{tpu_custom_call.1} parent=1 // pred_region
      %608 = dma.done [#allocation12], 16
    $region57: #{tpu_custom_call.1} parent=1 // pred_fallthru
      _
    %609 = vsyncpa [#allocation3], 1
    %610 = vsyncpa [#allocation6], 1
    %611 = vsyncpa [#allocation9], 1
    %612 = vsyncpa [#allocation4], 1
    %613 = vsyncpa [#allocation12], 1

</llo_original>
